<compile_context>
chip_gen: v7x
topology: tpu7x:2x2x1
jax: 0.10.0
libtpu: 0.0.40
codegen_flags: <defaults>
</compile_context>

<pallas_src>
import functools

import numpy as np
import jax
import jax.numpy as jnp
from jax.experimental import pallas as pl
from jax.experimental.pallas import tpu as pltpu


# ----------------------------- fused Pallas kernel ----------------------------- #

def fused_cnnwide_kernel(x_ref, wconv_ref, bconv_ref, w1_ref, b1_ref, w2_ref, b2_ref,
                         out_ref, *, n_tags, with_prob):
    """Whole forward pass for one batch tile.

    x:     (Bt, S*E)    bf16, lane-dense (S*E = 256)
    wconv: (S*E, Tp*Cp) bf16 Toeplitz/unfolded conv weight (Tp, Cp powers of two)
    bconv: (1, Cp) f32  conv biases (channels >= 3*C zero-padded)
    w1:    (Cp, H) f32  (rows >= 3*C are zero)      b1: (1, H)
    w2:    (H, n_tags)                              b2: (1, n_tags)
    out:   (Bt, n_tags) log-probs, or (Bt, 2*n_tags) = [log-probs || probs] when with_prob
    """
    # Conv for every (time position, branch, channel) in ONE lane-aligned MXU matmul
    # (K = 256, N = Tp*Cp = 512); bf16 operands, f32 accumulation.
    conv = jnp.dot(x_ref[...], wconv_ref[...], preferred_element_type=jnp.float32)

    # MaxPool over time.  Columns are ordered t*Cp + channel, t = 0..Tp-1; time positions that
    # are invalid for a branch duplicate a valid one, so max over all Tp columns == max over the
    # valid ones (exactly, no mask needed).  log2(Tp) halving steps of static lane slices +
    # elementwise maxima; the wide early steps are 128-lane aligned (free vreg selection).
    cp = bconv_ref.shape[1]
    n = conv.shape[1]
    while n > cp:
        n //= 2
        conv = jnp.maximum(conv[:, :n], conv[:, n:])
    pooled = conv                                           # (Bt, Cp)

    # Conv bias + ReLU, hoisted out of the pool: bias is constant in t and ReLU is monotone, so
    # relu(max_t(conv_t) + b) == max_t(relu(conv_t + b))  == Conv -> ReLU -> MaxPool exactly.
    feat = jnp.maximum(pooled + bconv_ref[...], 0.0)        # pad channels stay 0

    # fc_pipeline: Linear -> ReLU -> Dropout(0.5)
    # TODO(synk): train-mode dropout not implemented (eval-mode identity only).
    h = jnp.maximum(
        jnp.dot(feat, w1_ref[...], preferred_element_type=jnp.float32) + b1_ref[...], 0.0)

    # hiddenTotag
    logits = jnp.dot(h, w2_ref[...], preferred_element_type=jnp.float32) + b2_ref[...]

    # Stable log_softmax / softmax (all f32 VPU/EUP math).
    mx = jnp.max(logits, axis=1, keepdims=True)
    z = logits - mx
    ez = jnp.exp(z)
    denom = jnp.sum(ez, axis=1, keepdims=True)
    logp = z - jnp.log(denom)                               # F.log_softmax(out, dim=1)
    if with_prob:
        prob = ez / denom                                   # exact F.softmax(out, dim=1)
        out_ref[...] = jnp.concatenate([logp, prob], axis=1)
    else:
        out_ref[...] = logp


# ------------------------------ parameters ------------------------------------ #

def init_params(key, emb=16, seq_len=16, kernel_heights=(3, 4, 5), c_out=8,
                hidden=32, n_tags=5):
    """Init mirroring CNNWide_Labeler._init_weights (weights), plus host-side packing of the
    three conv filters into a single Toeplitz/unfolded-conv matrix for the fused kernel.
    NOTE: _init_weights zeroes all biases; small random biases are used here so the
    correctness check also exercises the bias paths (forward semantics are unchanged)."""
    k_min = min(kernel_heights)
    feat_dim = len(kernel_heights) * c_out                  # 24
    n_time = seq_len - k_min + 1                            # 14 valid positions (k_min branch)
    t_pad = int(pl.next_power_of_2(n_time))                 # 16
    c_pad = int(pl.next_power_of_2(feat_dim))               # 32

    branch_w = []
    for k in kernel_heights:
        key, sk = jax.random.split(key)
        n = k * emb * c_out                                 # kernel_h * kernel_w * out_channels
        w_oihw = jax.random.normal(sk, (c_out, 1, k, emb), jnp.float32) * jnp.sqrt(2.0 / n)
        branch_w.append(jnp.transpose(w_oihw[:, 0, :, :], (1, 2, 0)))     # (k, E, C)

    # Toeplitz / unfolded conv weight: column (t, branch b, channel c) holds branch b's filter
    # placed at rows tt*E .. (tt+k)*E, where tt = min(t, S-k) duplicates a valid position for
    # t out of range of that branch (keeps the time-max exact with no in-kernel masking).
    # Channels >= feat_dim (lane padding) are zero here and in bconv/w1, so they are inert.
    wtoe = np.zeros((seq_len * emb, t_pad * c_pad), np.float32)
    for b, (k, w_kec) in enumerate(zip(kernel_heights, branch_w)):
        w_flat = np.asarray(w_kec).reshape(k * emb, c_out)  # row = j*E + e
        for t in range(t_pad):
            tt = min(t, seq_len - k)
            col0 = t * c_pad + b * c_out
            wtoe[tt * emb:(tt + k) * emb, col0:col0 + c_out] = w_flat

    key, kb, k1, kb1, k2, kb2 = jax.random.split(key, 6)
    bconv = 0.01 * jax.random.normal(kb, (1, feat_dim), jnp.float32)
    w1 = 0.01 * jax.random.normal(k1, (feat_dim, hidden), jnp.float32)
    return {
        "kernel_heights": tuple(kernel_heights),
        "emb": emb, "seq_len": seq_len, "c_out": c_out,
        "branch_w": branch_w,                               # pure-JAX reference only
        "bconv": bconv, "w1": w1,                           # reference (unpadded, f32)
        "wconv": jnp.asarray(wtoe, jnp.bfloat16),           # (S*E, Tp*Cp) resident, bf16
        "bconv_pad": jnp.pad(bconv, ((0, 0), (0, c_pad - feat_dim))),
        "w1_pad": jnp.pad(w1, ((0, c_pad - feat_dim), (0, 0))),
        "b1": 0.01 * jax.random.normal(kb1, (1, hidden), jnp.float32),
        "w2": 0.01 * jax.random.normal(k2, (hidden, n_tags), jnp.float32),
        "b2": 0.01 * jax.random.normal(kb2, (1, n_tags), jnp.float32),
    }


# ------------------------------ forward wrapper -------------------------------- #

def _pick_b_tile(B):
    """Large tiles amortize the ~0.35us per-grid-step overhead, but keep >=2 grid steps when the
    batch allows it so dimension_semantics=("parallel",) can shard across v7x's two TensorCores.
    Cap at 2048 rows: bf16 x block (1 MiB, double-buffered) + f32 conv/pool intermediates
    (~6 MiB) + resident weights stay well inside the explicit 32 MiB VMEM limit on every
    generation (v5e 16 MiB default scoped / 128 MiB phys, v7x 64 MiB phys)."""
    if B <= 8:
        return B                                    # one full-extent block
    half = ((B + 1) // 2 + 7) // 8 * 8              # ceil(B/2), sublane-aligned
    return min(2048, half)


def cnnwide_forward(batch_seqs, params, tagprob=False, b_tile=None):
    """batch_seqs: NCHW (B, 1, S, E) exactly as the PyTorch module expects."""
    B = batch_seqs.shape[0]
    S, E = params["seq_len"], params["emb"]
    assert batch_seqs.shape[1:] == (1, S, E)
    n_tags = params["w2"].shape[-1]

    # Flatten NCHW -> (B, S*E) (free reshape of a contiguous array) and cast the only nontrivial
    # HBM stream to bf16 in the wrapper; the kernel's x block arrives lane-dense (256 lanes).
    x = batch_seqs.reshape(B, S * E).astype(jnp.bfloat16)

    if b_tile is None:
        b_tile = _pick_b_tile(B)
    n_out = 2 * n_tags if tagprob else n_tags

    def resident(arr):                              # whole-array, grid-invariant (weights/biases)
        return pl.BlockSpec(arr.shape, lambda i: (0,) * arr.ndim)

    kern = functools.partial(fused_cnnwide_kernel, n_tags=n_tags, with_prob=tagprob)

    # NOTE: a partial last batch tile (B % b_tile != 0) runs the matmuls/softmax on padded rows;
    # every op is row-independent and those rows are clipped on writeback, so this is benign --
    # do NOT "fix" it into a masked store.
    out = pl.pallas_call(
        kern,
        out_shape=jax.ShapeDtypeStruct((B, n_out), jnp.float32),
        grid_spec=pltpu.PrefetchScalarGridSpec(
            num_scalar_prefetch=0,
            grid=(pl.cdiv(B, b_tile),),
            in_specs=[
                pl.BlockSpec((b_tile, S * E), lambda i: (i, 0)),
                resident(params["wconv"]),
                resident(params["bconv_pad"]),
                resident(params["w1_pad"]), resident(params["b1"]),
                resident(params["w2"]), resident(params["b2"]),
            ],
            out_specs=pl.BlockSpec((b_tile, n_out), lambda i: (i, 0)),
        ),
        compiler_params=pltpu.CompilerParams(
            dimension_semantics=("parallel",),      # megacore-shards the batch axis on v7x
            vmem_limit_bytes=32 * 1024 * 1024,      # explicit; v5e's scoped default is only 16 MiB
        ),
    )(x, params["wconv"], params["bconv_pad"],
      params["w1_pad"], params["b1"], params["w2"], params["b2"])

    if tagprob:
        return out[:, :n_tags], out[:, n_tags:]     # split the single lane-dense output slab
    return out, None


# ------------------------------ pure-JAX reference ----------------------------- #

def reference_forward(batch_seqs, params):
    """Direct (unfused, per-branch, f32) mirror of CNNWide_Labeler.forward, eval mode."""
    x = batch_seqs[:, 0]                            # (B, S, E)
    B, S, E = x.shape
    ks = params["kernel_heights"]
    c = params["c_out"]
    feats = []
    for i, (k, w_kec) in enumerate(zip(ks, params["branch_w"])):
        T = S - k + 1
        conv = jnp.stack(
            [jnp.einsum("bje,jec->bc", x[:, t:t + k, :], w_kec) for t in range(T)],
            axis=1)                                 # (B, T, C) valid conv
        conv = conv + params["bconv"][:, i * c:(i + 1) * c][:, None, :]
        feats.append(jnp.max(jax.nn.relu(conv), axis=1))   # ReLU -> MaxPool over time
    feat = jnp.concatenate(feats, axis=1)
    h = jax.nn.relu(feat @ params["w1"] + params["b1"])
    logits = h @ params["w2"] + params["b2"]
    return jax.nn.log_softmax(logits, axis=1), jax.nn.softmax(logits, axis=1)


# ----------------------------------- main -------------------------------------- #

if __name__ == "__main__":
    key = jax.random.PRNGKey(0)
    key, xk, pk = jax.random.split(key, 3)

    B, S, E = 2, 16, 16
    x = jax.random.normal(xk, (B, 1, S, E), jnp.float32)    # NCHW, C_in = 1
    params = init_params(pk, emb=E, seq_len=S)

    tag_scores, tag_prob = cnnwide_forward(x, params, tagprob=True)
    tag_scores = jax.block_until_ready(tag_scores)
    tag_prob = jax.block_until_ready(tag_prob)

    # Also exercise the tagprob=False path (prob columns elided entirely).
    only_scores, none_prob = cnnwide_forward(x, params, tagprob=False)
    only_scores = jax.block_until_ready(only_scores)

    ref_scores, ref_prob = reference_forward(x, params)

    assert tag_scores.shape == (B, 5) and tag_prob.shape == (B, 5)
    assert none_prob is None
    # Normalization sanity.
    assert bool(jnp.all(jnp.abs(jnp.sum(jnp.exp(tag_scores), axis=1) - 1.0) < 1e-3))
    assert bool(jnp.all(jnp.abs(jnp.sum(tag_prob, axis=1) - 1.0) < 1e-3))
    # Match the unfused f32 pure-JAX reference.  The kernel's conv operands are bf16; the
    # resulting conv-stage noise is attenuated by the 0.01-scale fc/head weights, so the
    # log-probs land well inside these tolerances.
    assert bool(jnp.all(jnp.abs(tag_scores - ref_scores) < 5e-4))
    assert bool(jnp.all(jnp.abs(only_scores - ref_scores) < 5e-4))
    assert bool(jnp.all(jnp.abs(tag_prob - ref_prob) < 1e-3))

    print("KERNEL_OK")
</pallas_src>

<mosaic_0001>
module attributes {stable_mosaic.version = 11 : i64} {
  func.func @fused_cnnwide_kernel(%arg0: i32, %arg1: memref<2x256xbf16, #tpu.memory_space<vmem>>, %arg2: memref<256x512xbf16, #tpu.memory_space<vmem>>, %arg3: memref<1x32xf32, #tpu.memory_space<vmem>>, %arg4: memref<32x32xf32, #tpu.memory_space<vmem>>, %arg5: memref<1x32xf32, #tpu.memory_space<vmem>>, %arg6: memref<32x5xf32, #tpu.memory_space<vmem>>, %arg7: memref<1x5xf32, #tpu.memory_space<vmem>>, %arg8: memref<2x10xf32, #tpu.memory_space<vmem>>) attributes {dimension_semantics = [#tpu.dimension_semantics<parallel>], iteration_bounds = array<i64: 1>, scalar_prefetch = 0 : i64, scratch_operands = 0 : i64, tpu.core_type = #tpu.core_type<tc>, window_params = [{transform_indices = @transform_0, window_bounds = array<i64: 2, 256>}, {pipeline_mode = #tpu.pipeline_mode<synchronous>, transform_indices = @transform_1, window_bounds = array<i64: 256, 512>}, {pipeline_mode = #tpu.pipeline_mode<synchronous>, transform_indices = @transform_2, window_bounds = array<i64: 1, 32>}, {pipeline_mode = #tpu.pipeline_mode<synchronous>, transform_indices = @transform_3, window_bounds = array<i64: 32, 32>}, {pipeline_mode = #tpu.pipeline_mode<synchronous>, transform_indices = @transform_4, window_bounds = array<i64: 1, 32>}, {pipeline_mode = #tpu.pipeline_mode<synchronous>, transform_indices = @transform_5, window_bounds = array<i64: 32, 5>}, {pipeline_mode = #tpu.pipeline_mode<synchronous>, transform_indices = @transform_6, window_bounds = array<i64: 1, 5>}, {transform_indices = @transform_7, window_bounds = array<i64: 2, 10>}]} {
    %c0 = arith.constant 0 : index
    %c0_0 = arith.constant 0 : index
    %0 = vector.load %arg1[%c0, %c0_0] : memref<2x256xbf16, #tpu.memory_space<vmem>>, vector<2x256xbf16>
    %c0_1 = arith.constant 0 : index
    %c0_2 = arith.constant 0 : index
    %1 = vector.load %arg2[%c0_1, %c0_2] : memref<256x512xbf16, #tpu.memory_space<vmem>>, vector<256x512xbf16>
    %cst = arith.constant dense<0.000000e+00> : vector<2x512xf32>
    %2 = tpu.matmul %0, %1, %cst {dimension_numbers = #tpu.dot_dimension_numbers<[1], [0], [0], [1], [0, 0, 1, 1], [], []>} : vector<2x256xbf16>, vector<256x512xbf16>, vector<2x512xf32> -> vector<2x512xf32>
    %3 = vector.extract_strided_slice %2 {offsets = [0, 0], sizes = [2, 256], strides = [1, 1]} : vector<2x512xf32> to vector<2x256xf32>
    %4 = vector.extract_strided_slice %2 {offsets = [0, 256], sizes = [2, 256], strides = [1, 1]} : vector<2x512xf32> to vector<2x256xf32>
    %5 = arith.maximumf %3, %4 : vector<2x256xf32>
    %6 = vector.extract_strided_slice %5 {offsets = [0, 0], sizes = [2, 128], strides = [1, 1]} : vector<2x256xf32> to vector<2x128xf32>
    %7 = vector.extract_strided_slice %5 {offsets = [0, 128], sizes = [2, 128], strides = [1, 1]} : vector<2x256xf32> to vector<2x128xf32>
    %8 = arith.maximumf %6, %7 : vector<2x128xf32>
    %9 = vector.extract_strided_slice %8 {offsets = [0, 0], sizes = [2, 64], strides = [1, 1]} : vector<2x128xf32> to vector<2x64xf32>
    %10 = vector.extract_strided_slice %8 {offsets = [0, 64], sizes = [2, 64], strides = [1, 1]} : vector<2x128xf32> to vector<2x64xf32>
    %11 = arith.maximumf %9, %10 : vector<2x64xf32>
    %12 = vector.extract_strided_slice %11 {offsets = [0, 0], sizes = [2, 32], strides = [1, 1]} : vector<2x64xf32> to vector<2x32xf32>
    %13 = vector.extract_strided_slice %11 {offsets = [0, 32], sizes = [2, 32], strides = [1, 1]} : vector<2x64xf32> to vector<2x32xf32>
    %14 = arith.maximumf %12, %13 : vector<2x32xf32>
    %c0_3 = arith.constant 0 : index
    %c0_4 = arith.constant 0 : index
    %15 = vector.load %arg3[%c0_3, %c0_4] : memref<1x32xf32, #tpu.memory_space<vmem>>, vector<1x32xf32>
    %16 = vector.broadcast %15 : vector<1x32xf32> to vector<2x32xf32>
    %17 = arith.addf %14, %16 : vector<2x32xf32>
    %cst_5 = arith.constant 0.000000e+00 : f32
    %18 = vector.broadcast %cst_5 : f32 to vector<2x32xf32>
    %19 = arith.maximumf %17, %18 : vector<2x32xf32>
    %c0_6 = arith.constant 0 : index
    %c0_7 = arith.constant 0 : index
    %20 = vector.load %arg4[%c0_6, %c0_7] : memref<32x32xf32, #tpu.memory_space<vmem>>, vector<32x32xf32>
    %cst_8 = arith.constant dense<0.000000e+00> : vector<2x32xf32>
    %21 = tpu.matmul %19, %20, %cst_8 {dimension_numbers = #tpu.dot_dimension_numbers<[1], [0], [0], [1], [0, 0, 1, 1], [], []>} : vector<2x32xf32>, vector<32x32xf32>, vector<2x32xf32> -> vector<2x32xf32>
    %c0_9 = arith.constant 0 : index
    %c0_10 = arith.constant 0 : index
    %22 = vector.load %arg5[%c0_9, %c0_10] : memref<1x32xf32, #tpu.memory_space<vmem>>, vector<1x32xf32>
    %23 = vector.broadcast %22 : vector<1x32xf32> to vector<2x32xf32>
    %24 = arith.addf %21, %23 : vector<2x32xf32>
    %cst_11 = arith.constant 0.000000e+00 : f32
    %25 = vector.broadcast %cst_11 : f32 to vector<2x32xf32>
    %26 = arith.maximumf %24, %25 : vector<2x32xf32>
    %c0_12 = arith.constant 0 : index
    %c0_13 = arith.constant 0 : index
    %27 = vector.load %arg6[%c0_12, %c0_13] : memref<32x5xf32, #tpu.memory_space<vmem>>, vector<32x5xf32>
    %cst_14 = arith.constant dense<0.000000e+00> : vector<2x5xf32>
    %28 = tpu.matmul %26, %27, %cst_14 {dimension_numbers = #tpu.dot_dimension_numbers<[1], [0], [0], [1], [0, 0, 1, 1], [], []>} : vector<2x32xf32>, vector<32x5xf32>, vector<2x5xf32> -> vector<2x5xf32>
    %c0_15 = arith.constant 0 : index
    %c0_16 = arith.constant 0 : index
    %29 = vector.load %arg7[%c0_15, %c0_16] : memref<1x5xf32, #tpu.memory_space<vmem>>, vector<1x5xf32>
    %30 = vector.broadcast %29 : vector<1x5xf32> to vector<2x5xf32>
    %31 = arith.addf %28, %30 : vector<2x5xf32>
    %cst_17 = arith.constant dense<0xFF800000> : vector<2xf32>
    %32 = vector.multi_reduction <maximumf>, %31, %cst_17 [1] : vector<2x5xf32> to vector<2xf32>
    %33 = vector.shape_cast %32 : vector<2xf32> to vector<2x1xf32>
    %34 = vector.broadcast %33 : vector<2x1xf32> to vector<2x5xf32>
    %35 = arith.subf %31, %34 : vector<2x5xf32>
    %36 = math.exp %35 : vector<2x5xf32>
    %cst_18 = arith.constant dense<0.000000e+00> : vector<2xf32>
    %37 = vector.multi_reduction <add>, %36, %cst_18 [1] : vector<2x5xf32> to vector<2xf32>
    %38 = vector.shape_cast %37 : vector<2xf32> to vector<2x1xf32>
    %39 = math.log %38 : vector<2x1xf32>
    %40 = vector.broadcast %39 : vector<2x1xf32> to vector<2x5xf32>
    %41 = arith.subf %35, %40 : vector<2x5xf32>
    %42 = vector.broadcast %38 : vector<2x1xf32> to vector<2x5xf32>
    %43 = arith.divf %36, %42 : vector<2x5xf32>
    %44 = tpu.concatenate %41, %43 in 1 : vector<2x5xf32>, vector<2x5xf32> -> vector<2x10xf32>
    %c0_19 = arith.constant 0 : index
    %c0_20 = arith.constant 0 : index
    %45 = vector.load %arg8[%c0_19, %c0_20] : memref<2x10xf32, #tpu.memory_space<vmem>>, vector<2x10xf32>
    tpu.vector_store %arg8[%c0_19, %c0_20], %44 {strides = array<i32>} : memref<2x10xf32, #tpu.memory_space<vmem>>, vector<2x10xf32>,
    return
  }
  func.func @transform_0(%arg0: i32) -> (i32, i32) {
    %c0_i32 = arith.constant 0 : i32
    %c0_i32_0 = arith.constant 0 : i32
    return %arg0, %c0_i32 : i32, i32
  }
  func.func @transform_1(%arg0: i32) -> (i32, i32) {
    %c0_i32 = arith.constant 0 : i32
    %c0_i32_0 = arith.constant 0 : i32
    %c0_i32_1 = arith.constant 0 : i32
    return %c0_i32, %c0_i32_0 : i32, i32
  }
  func.func @transform_2(%arg0: i32) -> (i32, i32) {
    %c0_i32 = arith.constant 0 : i32
    %c0_i32_0 = arith.constant 0 : i32
    %c0_i32_1 = arith.constant 0 : i32
    return %c0_i32, %c0_i32_0 : i32, i32
  }
  func.func @transform_3(%arg0: i32) -> (i32, i32) {
    %c0_i32 = arith.constant 0 : i32
    %c0_i32_0 = arith.constant 0 : i32
    %c0_i32_1 = arith.constant 0 : i32
    return %c0_i32, %c0_i32_0 : i32, i32
  }
  func.func @transform_4(%arg0: i32) -> (i32, i32) {
    %c0_i32 = arith.constant 0 : i32
    %c0_i32_0 = arith.constant 0 : i32
    %c0_i32_1 = arith.constant 0 : i32
    return %c0_i32, %c0_i32_0 : i32, i32
  }
  func.func @transform_5(%arg0: i32) -> (i32, i32) {
    %c0_i32 = arith.constant 0 : i32
    %c0_i32_0 = arith.constant 0 : i32
    %c0_i32_1 = arith.constant 0 : i32
    return %c0_i32, %c0_i32_0 : i32, i32
  }
  func.func @transform_6(%arg0: i32) -> (i32, i32) {
    %c0_i32 = arith.constant 0 : i32
    %c0_i32_0 = arith.constant 0 : i32
    %c0_i32_1 = arith.constant 0 : i32
    return %c0_i32, %c0_i32_0 : i32, i32
  }
  func.func @transform_7(%arg0: i32) -> (i32, i32) {
    %c0_i32 = arith.constant 0 : i32
    %c0_i32_0 = arith.constant 0 : i32
    return %arg0, %c0_i32 : i32, i32
  }
}

</mosaic_0001>

<llo_original>
// kernel: tpu_custom_call.1
$region0: #{tpu_custom_call.1}
  #allocation0 [shape = 'u32[]', space=smem, size = 0x4, offset = 0x4, fixed_abs, tag = 'smem constant byte address 0x4 - core index']
  #allocation1 [shape = 'u32[144,128]{1,0:T(1,128)}', space=vmem, size = 0x12000, scoped, tag = 'internal scratch']
  %s0 = inlined_call_operand.vmem [shape: bf16[2,256], index: 0, kind: input, shape index: {}]
  %s1 = inlined_call_operand.hbm [shape: bf16[256,512], index: 1, kind: input, shape index: {}]
  %s2 = inlined_call_operand.vmem [shape: f32[1,32], index: 2, kind: input, shape index: {}]
  %s3 = inlined_call_operand.vmem [shape: f32[32,32], index: 3, kind: input, shape index: {}]
  %s4 = inlined_call_operand.vmem [shape: f32[1,32], index: 4, kind: input, shape index: {}]
  %s5 = inlined_call_operand.vmem [shape: f32[32,5], index: 5, kind: input, shape index: {}]
  %s6 = inlined_call_operand.vmem [shape: f32[1,5], index: 6, kind: input, shape index: {}]
  %s7 = inlined_call_operand.hbm [shape: f32[2,10], index: 7, kind: output, shape index: {}]
  %s8 = sld [smem:[#allocation0]]
  $region42: #{tpu_custom_call.1} parent=0
    _
  %s10 = ssub.s32 1, %s8
  %s11 = scalar_select 0, %s10, %s8
  $region1: #{tpu_custom_call.1} parent=0
    #allocation2 [shape = 'u8[262144]{0}', space=vmem, size = 0x40000, scoped, tag = 'input window, operand 1, single buffered']
    #allocation3 [shape = 's32[1]{0}', space=sflag, size = 0x4, scoped, tag = 'scoped memory for tpu_custom_call.1']
    #allocation4 [shape = 's32[1]{0}', space=sflag, size = 0x4, scoped, tag = 'scoped memory for tpu_custom_call.1']
    #allocation5 [shape = 'u8[1024]{0}', space=vmem, size = 0x400, scoped, tag = 'output window, operand 0, single buffered']
    %12 = vsyncpa [#allocation3], 0
    %13 = vsyncpa [#allocation4], 0
    // Predicated region
    $region2: #{tpu_custom_call.1} parent=1 // pred_check
      _
    $region3: #{tpu_custom_call.1} parent=1 // pred_check_branch
      %15 = sbr.rel (0) target = $region5
    $region4: #{tpu_custom_call.1} parent=1 // pred_region
      _
    $region5: #{tpu_custom_call.1} parent=1 // pred_fallthru
      _
    // Predicated region
    $region6: #{tpu_custom_call.1} parent=1 // pred_check
      _
    $region7: #{tpu_custom_call.1} parent=1 // pred_check_branch
      %17 = sbr.rel (0) target = $region9
    $region8: #{tpu_custom_call.1} parent=1 // pred_region
      %s19 = ssub.s32 8192, 8192
      %20 = vsyncadd [#allocation3], %s19
      %s21 = sshll.u32 [#allocation2], 4
      %s22 = int_to_ptr.vmem [resolvable:$true] %s21
      %27 = dma.hbm_to_vmem [thread:$0]  %s1, 8192, %s22, [#allocation3], 256, 256, 16
    $region9: #{tpu_custom_call.1} parent=1 // pred_fallthru
      _
    // Predicated region
    $region10: #{tpu_custom_call.1} parent=1 // pred_check
      _
    $region11: #{tpu_custom_call.1} parent=1 // pred_check_branch
      %29 = sbr.rel (0) target = $region13
    $region12: #{tpu_custom_call.1} parent=1 // pred_region
      _
    $region13: #{tpu_custom_call.1} parent=1 // pred_fallthru
      _
    // Predicated region
    $region14: #{tpu_custom_call.1} parent=1 // pred_check
      _
    $region15: #{tpu_custom_call.1} parent=1 // pred_check_branch
      %31 = sbr.rel (0) target = $region17
    $region16: #{tpu_custom_call.1} parent=1 // pred_region
      _
    $region17: #{tpu_custom_call.1} parent=1 // pred_fallthru
      _
    // Predicated region
    $region18: #{tpu_custom_call.1} parent=1 // pred_check
      _
    $region19: #{tpu_custom_call.1} parent=1 // pred_check_branch
      %33 = sbr.rel (0) target = $region21
    $region20: #{tpu_custom_call.1} parent=1 // pred_region
      _
    $region21: #{tpu_custom_call.1} parent=1 // pred_fallthru
      _
    // Predicated region
    $region22: #{tpu_custom_call.1} parent=1 // pred_check
      _
    $region23: #{tpu_custom_call.1} parent=1 // pred_check_branch
      %35 = sbr.rel (0) target = $region25
    $region24: #{tpu_custom_call.1} parent=1 // pred_region
      _
    $region25: #{tpu_custom_call.1} parent=1 // pred_fallthru
      _
    // Predicated region
    $region26: #{tpu_custom_call.1} parent=1 // pred_check
      _
    $region27: #{tpu_custom_call.1} parent=1 // pred_check_branch
      %37 = sbr.rel (0) target = $region29
    $region28: #{tpu_custom_call.1} parent=1 // pred_region
      _
    $region29: #{tpu_custom_call.1} parent=1 // pred_fallthru
      _
    // Predicated region
    $region30: #{tpu_custom_call.1} parent=1 // pred_check
      _
    $region31: #{tpu_custom_call.1} parent=1 // pred_check_branch
      %39 = sbr.rel (0) target = $region33
    $region32: #{tpu_custom_call.1} parent=1 // pred_region
      %40 = dma.done [#allocation3], 8192
    $region33: #{tpu_custom_call.1} parent=1 // pred_fallthru
      _
    %v41 = vld [vmem:[%s0] sm:$0x3]
    %v42 = vld [vmem:[#allocation2] sm:$0xff]
    %v43 = vld [vmem:[#allocation2 + $0x8] sm:$0xff]
    %v44 = vld [vmem:[#allocation2 + $0x10] sm:$0xff]
    %v45 = vld [vmem:[#allocation2 + $0x18] sm:$0xff]
    %v46 = vld [vmem:[#allocation2 + $0x20] sm:$0xff]
    %v47 = vld [vmem:[#allocation2 + $0x28] sm:$0xff]
    %v48 = vld [vmem:[#allocation2 + $0x30] sm:$0xff]
    %v49 = vld [vmem:[#allocation2 + $0x38] sm:$0xff]
    %v50 = vld [vmem:[#allocation2 + $0x40] sm:$0xff]
    %v51 = vld [vmem:[#allocation2 + $0x48] sm:$0xff]
    %v52 = vld [vmem:[#allocation2 + $0x50] sm:$0xff]
    %v53 = vld [vmem:[#allocation2 + $0x58] sm:$0xff]
    %v54 = vld [vmem:[#allocation2 + $0x60] sm:$0xff]
    %v55 = vld [vmem:[#allocation2 + $0x68] sm:$0xff]
    %v56 = vld [vmem:[#allocation2 + $0x70] sm:$0xff]
    %v57 = vld [vmem:[#allocation2 + $0x78] sm:$0xff]
    %v58 = vld [vmem:[#allocation2 + $0x80] sm:$0xff]
    %v59 = vld [vmem:[#allocation2 + $0x88] sm:$0xff]
    %v60 = vld [vmem:[#allocation2 + $0x90] sm:$0xff]
    %v61 = vld [vmem:[#allocation2 + $0x98] sm:$0xff]
    %v62 = vld [vmem:[#allocation2 + $0xa0] sm:$0xff]
    %v63 = vld [vmem:[#allocation2 + $0xa8] sm:$0xff]
    %v64 = vld [vmem:[#allocation2 + $0xb0] sm:$0xff]
    %v65 = vld [vmem:[#allocation2 + $0xb8] sm:$0xff]
    %v66 = vld [vmem:[#allocation2 + $0xc0] sm:$0xff]
    %v67 = vld [vmem:[#allocation2 + $0xc8] sm:$0xff]
    %v68 = vld [vmem:[#allocation2 + $0xd0] sm:$0xff]
    %v69 = vld [vmem:[#allocation2 + $0xd8] sm:$0xff]
    %v70 = vld [vmem:[#allocation2 + $0xe0] sm:$0xff]
    %v71 = vld [vmem:[#allocation2 + $0xe8] sm:$0xff]
    %v72 = vld [vmem:[#allocation2 + $0xf0] sm:$0xff]
    %v73 = vld [vmem:[#allocation2 + $0xf8] sm:$0xff]
    %v74 = vld [vmem:[#allocation2 + $0x100] sm:$0xff]
    %v75 = vld [vmem:[#allocation2 + $0x108] sm:$0xff]
    %v76 = vld [vmem:[#allocation2 + $0x110] sm:$0xff]
    %v77 = vld [vmem:[#allocation2 + $0x118] sm:$0xff]
    %v78 = vld [vmem:[#allocation2 + $0x120] sm:$0xff]
    %v79 = vld [vmem:[#allocation2 + $0x128] sm:$0xff]
    %v80 = vld [vmem:[#allocation2 + $0x130] sm:$0xff]
    %v81 = vld [vmem:[#allocation2 + $0x138] sm:$0xff]
    %v82 = vld [vmem:[#allocation2 + $0x140] sm:$0xff]
    %v83 = vld [vmem:[#allocation2 + $0x148] sm:$0xff]
    %v84 = vld [vmem:[#allocation2 + $0x150] sm:$0xff]
    %v85 = vld [vmem:[#allocation2 + $0x158] sm:$0xff]
    %v86 = vld [vmem:[#allocation2 + $0x160] sm:$0xff]
    %v87 = vld [vmem:[#allocation2 + $0x168] sm:$0xff]
    %v88 = vld [vmem:[#allocation2 + $0x170] sm:$0xff]
    %v89 = vld [vmem:[#allocation2 + $0x178] sm:$0xff]
    %v90 = vld [vmem:[#allocation2 + $0x180] sm:$0xff]
    %v91 = vld [vmem:[#allocation2 + $0x188] sm:$0xff]
    %v92 = vld [vmem:[#allocation2 + $0x190] sm:$0xff]
    %v93 = vld [vmem:[#allocation2 + $0x198] sm:$0xff]
    %v94 = vld [vmem:[#allocation2 + $0x1a0] sm:$0xff]
    %v95 = vld [vmem:[#allocation2 + $0x1a8] sm:$0xff]
    %v96 = vld [vmem:[#allocation2 + $0x1b0] sm:$0xff]
    %v97 = vld [vmem:[#allocation2 + $0x1b8] sm:$0xff]
    %v98 = vld [vmem:[#allocation2 + $0x1c0] sm:$0xff]
    %v99 = vld [vmem:[#allocation2 + $0x1c8] sm:$0xff]
    %v100 = vld [vmem:[#allocation2 + $0x1d0] sm:$0xff]
    %v101 = vld [vmem:[#allocation2 + $0x1d8] sm:$0xff]
    %v102 = vld [vmem:[#allocation2 + $0x1e0] sm:$0xff]
    %v103 = vld [vmem:[#allocation2 + $0x1e8] sm:$0xff]
    %v104 = vld [vmem:[#allocation2 + $0x1f0] sm:$0xff]
    %v105 = vld [vmem:[#allocation2 + $0x1f8] sm:$0xff]
    %v108 = vunpack.c.l.s4 1966171168
    %v109 = vunpack.c.0.s8 %v108
    %v110 = vlaneseq
    %v111 = vshrl.u32 %v110, 7
    %v112 = vsub.s32 %v109, %v111
    %v113 = vrot.slane %v41, %v112
    %v114 = vcombine.high %v113, %v113
    %v116 = vunpack.c.l.s4 1966171168
    %v117 = vunpack.c.0.s8 %v116
    %v118 = vlaneseq
    %v119 = vshrl.u32 %v118, 7
    %v120 = vsub.s32 %v117, %v119
    %v121 = vrot.slane %v113, %v120
    %v123 = vunpack.c.l.s4 1966171168
    %v124 = vunpack.c.0.s8 %v123
    %v125 = vlaneseq
    %v126 = vshrl.u32 %v125, 7
    %v127 = vsub.s32 %v124, %v126
    %v128 = vrot.slane %v114, %v127
    %v195 = vunpack.c.l.b16 %v42
    %v196 = vunpack.c.h.b16 %v42
    %v197 = vunpack.c.l.b16 %v43
    %v198 = vunpack.c.h.b16 %v43
    %v199 = vunpack.c.l.b16 %v44
    %v200 = vunpack.c.h.b16 %v44
    %v201 = vunpack.c.l.b16 %v45
    %v202 = vunpack.c.h.b16 %v45
    %v203 = vunpack.c.l.b16 %v46
    %v204 = vunpack.c.h.b16 %v46
    %v205 = vunpack.c.l.b16 %v47
    %v206 = vunpack.c.h.b16 %v47
    %v207 = vunpack.c.l.b16 %v48
    %v208 = vunpack.c.h.b16 %v48
    %v209 = vunpack.c.l.b16 %v49
    %v210 = vunpack.c.h.b16 %v49
    %v211 = vunpack.c.l.b16 %v50
    %v212 = vunpack.c.h.b16 %v50
    %v213 = vunpack.c.l.b16 %v51
    %v214 = vunpack.c.h.b16 %v51
    %v215 = vunpack.c.l.b16 %v52
    %v216 = vunpack.c.h.b16 %v52
    %v217 = vunpack.c.l.b16 %v53
    %v218 = vunpack.c.h.b16 %v53
    %v219 = vunpack.c.l.b16 %v54
    %v220 = vunpack.c.h.b16 %v54
    %v221 = vunpack.c.l.b16 %v55
    %v222 = vunpack.c.h.b16 %v55
    %v223 = vunpack.c.l.b16 %v56
    %v224 = vunpack.c.h.b16 %v56
    %v225 = vunpack.c.l.b16 %v57
    %v226 = vunpack.c.h.b16 %v57
    %v227 = vunpack.c.l.b16 %v58
    %v228 = vunpack.c.h.b16 %v58
    %v229 = vunpack.c.l.b16 %v59
    %v230 = vunpack.c.h.b16 %v59
    %v231 = vunpack.c.l.b16 %v60
    %v232 = vunpack.c.h.b16 %v60
    %v233 = vunpack.c.l.b16 %v61
    %v234 = vunpack.c.h.b16 %v61
    %v235 = vunpack.c.l.b16 %v62
    %v236 = vunpack.c.h.b16 %v62
    %v237 = vunpack.c.l.b16 %v63
    %v238 = vunpack.c.h.b16 %v63
    %v239 = vunpack.c.l.b16 %v64
    %v240 = vunpack.c.h.b16 %v64
    %v241 = vunpack.c.l.b16 %v65
    %v242 = vunpack.c.h.b16 %v65
    %v243 = vunpack.c.l.b16 %v66
    %v244 = vunpack.c.h.b16 %v66
    %v245 = vunpack.c.l.b16 %v67
    %v246 = vunpack.c.h.b16 %v67
    %v247 = vunpack.c.l.b16 %v68
    %v248 = vunpack.c.h.b16 %v68
    %v249 = vunpack.c.l.b16 %v69
    %v250 = vunpack.c.h.b16 %v69
    %v251 = vunpack.c.l.b16 %v70
    %v252 = vunpack.c.h.b16 %v70
    %v253 = vunpack.c.l.b16 %v71
    %v254 = vunpack.c.h.b16 %v71
    %v255 = vunpack.c.l.b16 %v72
    %v256 = vunpack.c.h.b16 %v72
    %v257 = vunpack.c.l.b16 %v73
    %v258 = vunpack.c.h.b16 %v73
    %v259 = vunpack.c.l.b16 %v74
    %v260 = vunpack.c.h.b16 %v74
    %v261 = vunpack.c.l.b16 %v75
    %v262 = vunpack.c.h.b16 %v75
    %v263 = vunpack.c.l.b16 %v76
    %v264 = vunpack.c.h.b16 %v76
    %v265 = vunpack.c.l.b16 %v77
    %v266 = vunpack.c.h.b16 %v77
    %v267 = vunpack.c.l.b16 %v78
    %v268 = vunpack.c.h.b16 %v78
    %v269 = vunpack.c.l.b16 %v79
    %v270 = vunpack.c.h.b16 %v79
    %v271 = vunpack.c.l.b16 %v80
    %v272 = vunpack.c.h.b16 %v80
    %v273 = vunpack.c.l.b16 %v81
    %v274 = vunpack.c.h.b16 %v81
    %v275 = vunpack.c.l.b16 %v82
    %v276 = vunpack.c.h.b16 %v82
    %v277 = vunpack.c.l.b16 %v83
    %v278 = vunpack.c.h.b16 %v83
    %v279 = vunpack.c.l.b16 %v84
    %v280 = vunpack.c.h.b16 %v84
    %v281 = vunpack.c.l.b16 %v85
    %v282 = vunpack.c.h.b16 %v85
    %v283 = vunpack.c.l.b16 %v86
    %v284 = vunpack.c.h.b16 %v86
    %v285 = vunpack.c.l.b16 %v87
    %v286 = vunpack.c.h.b16 %v87
    %v287 = vunpack.c.l.b16 %v88
    %v288 = vunpack.c.h.b16 %v88
    %v289 = vunpack.c.l.b16 %v89
    %v290 = vunpack.c.h.b16 %v89
    %v291 = vunpack.c.l.b16 %v90
    %v292 = vunpack.c.h.b16 %v90
    %v293 = vunpack.c.l.b16 %v91
    %v294 = vunpack.c.h.b16 %v91
    %v295 = vunpack.c.l.b16 %v92
    %v296 = vunpack.c.h.b16 %v92
    %v297 = vunpack.c.l.b16 %v93
    %v298 = vunpack.c.h.b16 %v93
    %v299 = vunpack.c.l.b16 %v94
    %v300 = vunpack.c.h.b16 %v94
    %v301 = vunpack.c.l.b16 %v95
    %v302 = vunpack.c.h.b16 %v95
    %v303 = vunpack.c.l.b16 %v96
    %v304 = vunpack.c.h.b16 %v96
    %v305 = vunpack.c.l.b16 %v97
    %v306 = vunpack.c.h.b16 %v97
    %v307 = vunpack.c.l.b16 %v98
    %v308 = vunpack.c.h.b16 %v98
    %v309 = vunpack.c.l.b16 %v99
    %v310 = vunpack.c.h.b16 %v99
    %v311 = vunpack.c.l.b16 %v100
    %v312 = vunpack.c.h.b16 %v100
    %v313 = vunpack.c.l.b16 %v101
    %v314 = vunpack.c.h.b16 %v101
    %v315 = vunpack.c.l.b16 %v102
    %v316 = vunpack.c.h.b16 %v102
    %v317 = vunpack.c.l.b16 %v103
    %v318 = vunpack.c.h.b16 %v103
    %v319 = vunpack.c.l.b16 %v104
    %v320 = vunpack.c.h.b16 %v104
    %v321 = vunpack.c.l.b16 %v105
    %v322 = vunpack.c.h.b16 %v105
    %v323 = vpack.c.b16 %v199, %v195
    %v324 = vpack.c.b16 %v200, %v196
    %v325 = vpack.c.b16 %v201, %v197
    %v326 = vpack.c.b16 %v202, %v198
    %v327 = vpack.c.b16 %v207, %v203
    %v328 = vpack.c.b16 %v208, %v204
    %v329 = vpack.c.b16 %v209, %v205
    %v330 = vpack.c.b16 %v210, %v206
    %v331 = vpack.c.b16 %v215, %v211
    %v332 = vpack.c.b16 %v216, %v212
    %v333 = vpack.c.b16 %v217, %v213
    %v334 = vpack.c.b16 %v218, %v214
    %v335 = vpack.c.b16 %v223, %v219
    %v336 = vpack.c.b16 %v224, %v220
    %v337 = vpack.c.b16 %v225, %v221
    %v338 = vpack.c.b16 %v226, %v222
    %v339 = vpack.c.b16 %v231, %v227
    %v340 = vpack.c.b16 %v232, %v228
    %v341 = vpack.c.b16 %v233, %v229
    %v342 = vpack.c.b16 %v234, %v230
    %v343 = vpack.c.b16 %v239, %v235
    %v344 = vpack.c.b16 %v240, %v236
    %v345 = vpack.c.b16 %v241, %v237
    %v346 = vpack.c.b16 %v242, %v238
    %v347 = vpack.c.b16 %v247, %v243
    %v348 = vpack.c.b16 %v248, %v244
    %v349 = vpack.c.b16 %v249, %v245
    %v350 = vpack.c.b16 %v250, %v246
    %v351 = vpack.c.b16 %v255, %v251
    %v352 = vpack.c.b16 %v256, %v252
    %v353 = vpack.c.b16 %v257, %v253
    %v354 = vpack.c.b16 %v258, %v254
    %v355 = vpack.c.b16 %v263, %v259
    %v356 = vpack.c.b16 %v264, %v260
    %v357 = vpack.c.b16 %v265, %v261
    %v358 = vpack.c.b16 %v266, %v262
    %v359 = vpack.c.b16 %v271, %v267
    %v360 = vpack.c.b16 %v272, %v268
    %v361 = vpack.c.b16 %v273, %v269
    %v362 = vpack.c.b16 %v274, %v270
    %v363 = vpack.c.b16 %v279, %v275
    %v364 = vpack.c.b16 %v280, %v276
    %v365 = vpack.c.b16 %v281, %v277
    %v366 = vpack.c.b16 %v282, %v278
    %v367 = vpack.c.b16 %v287, %v283
    %v368 = vpack.c.b16 %v288, %v284
    %v369 = vpack.c.b16 %v289, %v285
    %v370 = vpack.c.b16 %v290, %v286
    %v371 = vpack.c.b16 %v295, %v291
    %v372 = vpack.c.b16 %v296, %v292
    %v373 = vpack.c.b16 %v297, %v293
    %v374 = vpack.c.b16 %v298, %v294
    %v375 = vpack.c.b16 %v303, %v299
    %v376 = vpack.c.b16 %v304, %v300
    %v377 = vpack.c.b16 %v305, %v301
    %v378 = vpack.c.b16 %v306, %v302
    %v379 = vpack.c.b16 %v311, %v307
    %v380 = vpack.c.b16 %v312, %v308
    %v381 = vpack.c.b16 %v313, %v309
    %v382 = vpack.c.b16 %v314, %v310
    %v383 = vpack.c.b16 %v319, %v315
    %v384 = vpack.c.b16 %v320, %v316
    %v385 = vpack.c.b16 %v321, %v317
    %v386 = vpack.c.b16 %v322, %v318
    %451 = vmatprep.subr.bf16.mxu0 %v324
    %452 = vmatpush1.bf16.msra.mxu0 %v323
    %453 = vmatprep.subr.bf16.mxu0 %v328
    %454 = vmatpush1.bf16.msra.mxu0 %v327
    %455 = vmatprep.subr.bf16.mxu0 %v332
    %456 = vmatpush1.bf16.msra.mxu0 %v331
    %457 = vmatprep.subr.bf16.mxu0 %v336
    %458 = vmatpush1.bf16.msra.mxu0 %v335
    %459 = vmatprep.subr.bf16.mxu0 %v340
    %460 = vmatpush1.bf16.msra.mxu0 %v339
    %461 = vmatprep.subr.bf16.mxu0 %v344
    %462 = vmatpush1.bf16.msra.mxu0 %v343
    %463 = vmatprep.subr.bf16.mxu0 %v348
    %464 = vmatpush1.bf16.msra.mxu0 %v347
    %465 = vmatprep.subr.bf16.mxu0 %v352
    %466 = vmatpush1.bf16.msra.mxu0 %v351
    %467 = vmatprep.subr.bf16.mxu0 %v356
    %468 = vmatpush1.bf16.msra.mxu0 %v355
    %469 = vmatprep.subr.bf16.mxu0 %v360
    %470 = vmatpush1.bf16.msra.mxu0 %v359
    %471 = vmatprep.subr.bf16.mxu0 %v364
    %472 = vmatpush1.bf16.msra.mxu0 %v363
    %473 = vmatprep.subr.bf16.mxu0 %v368
    %474 = vmatpush1.bf16.msra.mxu0 %v367
    %475 = vmatprep.subr.bf16.mxu0 %v372
    %476 = vmatpush1.bf16.msra.mxu0 %v371
    %477 = vmatprep.subr.bf16.mxu0 %v376
    %478 = vmatpush1.bf16.msra.mxu0 %v375
    %479 = vmatprep.subr.bf16.mxu0 %v380
    %480 = vmatpush1.bf16.msra.mxu0 %v379
    %481 = vmatprep.subr.bf16.mxu0 %v384
    %482 = vmatpush1.bf16.msra.mxu0 %v383
    %483 = vmatprep.mubr.bf16.mxu0 %v128
    %484 = vmatmul.mubr.bf16.gmra.mrb[0].mxu0 %v121
    %v485 = vpop.f32.mrb[0].mxu0
    %v486 = vadd.f32 0.0, %v485
    %v487 = vpop.f32.mrb[0].mxu0
    %v488 = vadd.f32 0.0, %v487
    %v489 = vpop.f32.mrb[0].mxu0
    %v490 = vpop.f32.mrb[0].mxu0
    %491 = vdwg.mxu0
    %492 = vmatprep.subr.bf16.mxu0 %v326
    %493 = vmatpush1.bf16.msra.mxu0 %v325
    %494 = vmatprep.subr.bf16.mxu0 %v330
    %495 = vmatpush1.bf16.msra.mxu0 %v329
    %496 = vmatprep.subr.bf16.mxu0 %v334
    %497 = vmatpush1.bf16.msra.mxu0 %v333
    %498 = vmatprep.subr.bf16.mxu0 %v338
    %499 = vmatpush1.bf16.msra.mxu0 %v337
    %500 = vmatprep.subr.bf16.mxu0 %v342
    %501 = vmatpush1.bf16.msra.mxu0 %v341
    %502 = vmatprep.subr.bf16.mxu0 %v346
    %503 = vmatpush1.bf16.msra.mxu0 %v345
    %504 = vmatprep.subr.bf16.mxu0 %v350
    %505 = vmatpush1.bf16.msra.mxu0 %v349
    %506 = vmatprep.subr.bf16.mxu0 %v354
    %507 = vmatpush1.bf16.msra.mxu0 %v353
    %508 = vmatprep.subr.bf16.mxu0 %v358
    %509 = vmatpush1.bf16.msra.mxu0 %v357
    %510 = vmatprep.subr.bf16.mxu0 %v362
    %511 = vmatpush1.bf16.msra.mxu0 %v361
    %512 = vmatprep.subr.bf16.mxu0 %v366
    %513 = vmatpush1.bf16.msra.mxu0 %v365
    %514 = vmatprep.subr.bf16.mxu0 %v370
    %515 = vmatpush1.bf16.msra.mxu0 %v369
    %516 = vmatprep.subr.bf16.mxu0 %v374
    %517 = vmatpush1.bf16.msra.mxu0 %v373
    %518 = vmatprep.subr.bf16.mxu0 %v378
    %519 = vmatpush1.bf16.msra.mxu0 %v377
    %520 = vmatprep.subr.bf16.mxu0 %v382
    %521 = vmatpush1.bf16.msra.mxu0 %v381
    %522 = vmatprep.subr.bf16.mxu0 %v386
    %523 = vmatpush1.bf16.msra.mxu0 %v385
    %524 = vmatprep.mubr.bf16.mxu0 %v128
    %525 = vmatmul.mubr.bf16.gmra.mrb[0].mxu0 %v121
    %v526 = vpop.f32.mrb[0].mxu0
    %v527 = vadd.f32 0.0, %v526
    %v528 = vpop.f32.mrb[0].mxu0
    %v529 = vadd.f32 0.0, %v528
    %v530 = vpop.f32.mrb[0].mxu0
    %v531 = vpop.f32.mrb[0].mxu0
    %532 = vdwg.mxu0
    %v533 = vmax.f32 %v486, %v527
    %v534 = vmax.f32 %v488, %v529
    %v535 = vmax.f32 %v533, %v534
    %537 = vrot.lane.b32.xlu0 %v535, 64
    %v538 = vpop.permute.xlu0 %537
    %v540 = vmax.f32 %v535, %v538
    %542 = vrot.lane.b32.xlu0 %v540, 96
    %v543 = vpop.permute.xlu0 %542
    %v545 = vmax.f32 %v540, %v543
    %v546 = vld [vmem:[%s2] sm:$0x1]
    %v548 = vlaneseq
    %v549 = vshrl.u32 %v548, 7
    %v550 = vsub.s32 0, %v549
    %v551 = vrot.slane %v546, %v550
    %v553 = vadd.f32 %v545, %v551
    %v554 = vmax.f32 %v553, 0.0
    %v555 = vld [vmem:[%s3] sm:$0xff]
    %v556 = vld [vmem:[%s3 + $0x8] sm:$0xff]
    %v557 = vld [vmem:[%s3 + $0x10] sm:$0xff]
    %v558 = vld [vmem:[%s3 + $0x18] sm:$0xff]
    %v559 = vld [vmem:[%s4] sm:$0x1]
    %v561 = vlaneseq
    %v562 = vshrl.u32 %v561, 7
    %v563 = vsub.s32 0, %v562
    %v564 = vrot.slane %v559, %v563
    %vm566 = vcmask 261120
    %v568 = vsel %vm566, %v554, 0
    %570 = vmatprep.subr.mxu0 0.0
    %571 = vmatpush1.msra.mxu0 %v555
    %572 = vmatprep.subr.mxu0 0.0
    %573 = vmatpush1.msra.mxu0 %v556
    %574 = vmatprep.subr.mxu0 0.0
    %575 = vmatpush1.msra.mxu0 %v557
    %576 = vmatprep.subr.mxu0 0.0
    %577 = vmatpush1.msra.mxu0 %v558
    %578 = vmatprep.subr.mxu0 0.0
    %579 = vmatpush1.msra.mxu0 0.0
    %580 = vmatprep.subr.mxu0 0.0
    %581 = vmatpush1.msra.mxu0 0.0
    %582 = vmatprep.subr.mxu0 0.0
    %583 = vmatpush1.msra.mxu0 0.0
    %584 = vmatprep.subr.mxu0 0.0
    %585 = vmatpush1.msra.mxu0 0.0
    %586 = vmatprep.subr.mxu0 0.0
    %587 = vmatpush1.msra.mxu0 0.0
    %588 = vmatprep.subr.mxu0 0.0
    %589 = vmatpush1.msra.mxu0 0.0
    %590 = vmatprep.subr.mxu0 0.0
    %591 = vmatpush1.msra.mxu0 0.0
    %592 = vmatprep.subr.mxu0 0.0
    %593 = vmatpush1.msra.mxu0 0.0
    %594 = vmatprep.subr.mxu0 0.0
    %595 = vmatpush1.msra.mxu0 0.0
    %596 = vmatprep.subr.mxu0 0.0
    %597 = vmatpush1.msra.mxu0 0.0
    %598 = vmatprep.subr.mxu0 0.0
    %599 = vmatpush1.msra.mxu0 0.0
    %600 = vmatprep.subr.mxu0 0.0
    %601 = vmatpush1.msra.mxu0 0.0
    %602 = vmatprep.subr.mxu0 0.0
    %603 = vmatpush1.msra.mxu0 0.0
    %604 = vmatprep.subr.mxu0 0.0
    %605 = vmatpush1.msra.mxu0 0.0
    %606 = vmatprep.subr.mxu0 0.0
    %607 = vmatpush1.msra.mxu0 0.0
    %608 = vmatprep.subr.mxu0 0.0
    %609 = vmatpush1.msra.mxu0 0.0
    %610 = vmatprep.subr.mxu0 0.0
    %611 = vmatpush1.msra.mxu0 0.0
    %612 = vmatprep.subr.mxu0 0.0
    %613 = vmatpush1.msra.mxu0 0.0
    %614 = vmatprep.subr.mxu0 0.0
    %615 = vmatpush1.msra.mxu0 0.0
    %616 = vmatprep.subr.mxu0 0.0
    %617 = vmatpush1.msra.mxu0 0.0
    %618 = vmatprep.subr.mxu0 0.0
    %619 = vmatpush1.msra.mxu0 0.0
    %620 = vmatprep.subr.mxu0 0.0
    %621 = vmatpush1.msra.mxu0 0.0
    %622 = vmatprep.subr.mxu0 0.0
    %623 = vmatpush1.msra.mxu0 0.0
    %624 = vmatprep.subr.mxu0 0.0
    %625 = vmatpush1.msra.mxu0 0.0
    %626 = vmatprep.subr.mxu0 0.0
    %627 = vmatpush1.msra.mxu0 0.0
    %628 = vmatprep.subr.mxu0 0.0
    %629 = vmatpush1.msra.mxu0 0.0
    %630 = vmatprep.subr.mxu0 0.0
    %631 = vmatpush1.msra.mxu0 0.0
    %632 = vmatprep.subr.mxu0 0.0
    %633 = vmatpush1.msra.mxu0 0.0
    %634 = vmatprep.mubr.f32.mxu0 0.0
    %635 = vmatmul.mubr.f32.gmra.mrb[0].mxu0 %v568
    %v636 = vpop.f32.mrb[0].mxu0
    %v637 = vadd.f32 %v564, %v636
    %v638 = vpop.f32.mrb[0].mxu0
    %639 = vdwg.mxu0
    %v640 = vmax.f32 %v637, 0.0
    %v641 = vld [vmem:[%s5] sm:$0xff]
    %v642 = vld [vmem:[%s5 + $0x8] sm:$0xff]
    %v643 = vld [vmem:[%s5 + $0x10] sm:$0xff]
    %v644 = vld [vmem:[%s5 + $0x18] sm:$0xff]
    %v645 = vld [vmem:[%s6] sm:$0x1]
    %v647 = vlaneseq
    %v648 = vshrl.u32 %v647, 7
    %v649 = vsub.s32 0, %v648
    %v650 = vrot.slane %v645, %v649
    %v653 = vsel %vm566, %v640, 0
    %655 = vmatprep.subr.mxu0 0.0
    %656 = vmatpush1.msra.mxu0 %v641
    %657 = vmatprep.subr.mxu0 0.0
    %658 = vmatpush1.msra.mxu0 %v642
    %659 = vmatprep.subr.mxu0 0.0
    %660 = vmatpush1.msra.mxu0 %v643
    %661 = vmatprep.subr.mxu0 0.0
    %662 = vmatpush1.msra.mxu0 %v644
    %663 = vmatprep.subr.mxu0 0.0
    %664 = vmatpush1.msra.mxu0 0.0
    %665 = vmatprep.subr.mxu0 0.0
    %666 = vmatpush1.msra.mxu0 0.0
    %667 = vmatprep.subr.mxu0 0.0
    %668 = vmatpush1.msra.mxu0 0.0
    %669 = vmatprep.subr.mxu0 0.0
    %670 = vmatpush1.msra.mxu0 0.0
    %671 = vmatprep.subr.mxu0 0.0
    %672 = vmatpush1.msra.mxu0 0.0
    %673 = vmatprep.subr.mxu0 0.0
    %674 = vmatpush1.msra.mxu0 0.0
    %675 = vmatprep.subr.mxu0 0.0
    %676 = vmatpush1.msra.mxu0 0.0
    %677 = vmatprep.subr.mxu0 0.0
    %678 = vmatpush1.msra.mxu0 0.0
    %679 = vmatprep.subr.mxu0 0.0
    %680 = vmatpush1.msra.mxu0 0.0
    %681 = vmatprep.subr.mxu0 0.0
    %682 = vmatpush1.msra.mxu0 0.0
    %683 = vmatprep.subr.mxu0 0.0
    %684 = vmatpush1.msra.mxu0 0.0
    %685 = vmatprep.subr.mxu0 0.0
    %686 = vmatpush1.msra.mxu0 0.0
    %687 = vmatprep.subr.mxu0 0.0
    %688 = vmatpush1.msra.mxu0 0.0
    %689 = vmatprep.subr.mxu0 0.0
    %690 = vmatpush1.msra.mxu0 0.0
    %691 = vmatprep.subr.mxu0 0.0
    %692 = vmatpush1.msra.mxu0 0.0
    %693 = vmatprep.subr.mxu0 0.0
    %694 = vmatpush1.msra.mxu0 0.0
    %695 = vmatprep.subr.mxu0 0.0
    %696 = vmatpush1.msra.mxu0 0.0
    %697 = vmatprep.subr.mxu0 0.0
    %698 = vmatpush1.msra.mxu0 0.0
    %699 = vmatprep.subr.mxu0 0.0
    %700 = vmatpush1.msra.mxu0 0.0
    %701 = vmatprep.subr.mxu0 0.0
    %702 = vmatpush1.msra.mxu0 0.0
    %703 = vmatprep.subr.mxu0 0.0
    %704 = vmatpush1.msra.mxu0 0.0
    %705 = vmatprep.subr.mxu0 0.0
    %706 = vmatpush1.msra.mxu0 0.0
    %707 = vmatprep.subr.mxu0 0.0
    %708 = vmatpush1.msra.mxu0 0.0
    %709 = vmatprep.subr.mxu0 0.0
    %710 = vmatpush1.msra.mxu0 0.0
    %711 = vmatprep.subr.mxu0 0.0
    %712 = vmatpush1.msra.mxu0 0.0
    %713 = vmatprep.subr.mxu0 0.0
    %714 = vmatpush1.msra.mxu0 0.0
    %715 = vmatprep.subr.mxu0 0.0
    %716 = vmatpush1.msra.mxu0 0.0
    %717 = vmatprep.subr.mxu0 0.0
    %718 = vmatpush1.msra.mxu0 0.0
    %719 = vmatprep.mubr.f32.mxu0 0.0
    %720 = vmatmul.mubr.f32.gmra.mrb[0].mxu0 %v653
    %v721 = vpop.f32.mrb[0].mxu0
    %v722 = vadd.f32 %v650, %v721
    %v723 = vpop.f32.mrb[0].mxu0
    %724 = vdwg.mxu0
    %vm725 = vcmask 33792
    %v726 = vsel %vm725, %v722, -inf
    %727 = vmax.xlane.f32.xlu0 %v726
    %v728 = vpop.xlane.xlu0 %727
    %v729 = vsub.f32 %v722, %v728
    %v730 = vmul.f32 %v729, 1.442695
    %v731 = vpow.pop %v730
    %v732 = vsel %vm725, %v731, 0.0
    %733 = vadd.xlane.f32.xlu0 %v732
    %v734 = vpop.xlane.xlu0 %733
    %v735 = vlog2.pop %v734
    %v736 = vmul.f32 %v735, 0.6931472
    %v737 = vsub.f32 %v729, %v736
    %v738 = vrcp.pop %v734
    %v739 = vmul.f32 %v731, %v738
    %741 = vrot.lane.b32.xlu0 %v739, 5
    %v742 = vpop.permute.xlu0 %741
    %vm744 = vcmask 39936
    %v745 = vsel %vm744, %v737, %v742
    %vm746 = vcmask 74752
    %747 = vst.msk [vmem:[#allocation5] sm:$0x3] %vm746, %v745
    // Predicated region
    $region34: #{tpu_custom_call.1} parent=1 // pred_check
      _
    $region35: #{tpu_custom_call.1} parent=1 // pred_check_branch
      %749 = sbr.rel (0) target = $region37
    $region36: #{tpu_custom_call.1} parent=1 // pred_region
      %s751 = ssub.s32 32, 32
      %752 = vsyncadd [#allocation4], %s751
      %s754 = sshll.u32 [#allocation5], 4
      %s755 = int_to_ptr.vmem [resolvable:$true] %s754
      %757 = dma.vmem_to_hbm [thread:$0]  %s755, 32, %s7, [#allocation4]
    $region37: #{tpu_custom_call.1} parent=1 // pred_fallthru
      _
    // Predicated region
    $region38: #{tpu_custom_call.1} parent=1 // pred_check
      _
    $region39: #{tpu_custom_call.1} parent=1 // pred_check_branch
      %759 = sbr.rel (0) target = $region41
    $region40: #{tpu_custom_call.1} parent=1 // pred_region
      %760 = dma.done [#allocation4], 32
    $region41: #{tpu_custom_call.1} parent=1 // pred_fallthru
      _
    %761 = vsyncpa [#allocation3], 1
    %762 = vsyncpa [#allocation4], 1

</llo_original>
